<compile_context>
chip_gen: v6e
topology: v6e:2x2x1
jax: 0.10.0
libtpu: 0.0.40
codegen_flags: <defaults>
</compile_context>

<pallas_src>
import math

import numpy as np

import jax
import jax.numpy as jnp
from jax import lax
from jax.experimental import pallas as pl
from jax.experimental.pallas import tpu as pltpu


# ------------------------------ Pallas kernel -------------------------------

def _make_kernel(W, HW, offs):
    """offs: static list of (dh, dw) source offsets (im2col row-block order)."""

    def kernel(x_ref, w_ref, b_ref, m_ref, o_ref):
        # x_ref: (1, Cin_p, HW)   flat source activation (f32, lane-dense)
        # w_ref: (s*s*Cout, Kp*Kp*Cin_p)  phase-folded conv weights
        # b_ref: (s*s*Cout, 1)    phase-replicated bias
        # m_ref: (Kp*Kp, HW)      0/1 zero-padding validity mask per offset
        # o_ref: (1, s*s*Cout, HW)
        x2d = x_ref[0]                                      # (Cin_p, HW)

        cols = []
        for t, (dh, dw) in enumerate(offs):
            off = dh * W + dw                               # flat source shift
            if off == 0:
                shifted = x2d
            else:
                # static lane rotation (XLU): shifted[f] = x2d[(f + off) % HW]
                shifted = pltpu.roll(x2d, shift=(-off) % HW, axis=1)
            if dh == 0 and dw == 0:
                cols.append(shifted)                        # mask is all-ones
            else:
                m = m_ref[pl.ds(t, 1), :]                   # (1, HW) in {0,1}
                cols.append(shifted * m)                    # zero the padding
        imcol = jnp.concatenate(cols, axis=0)               # (Kp*Kp*Cin_p, HW)

        # Single f32 MXU matmul; output (s*s*Cout, HW) is fully lane-dense.
        y = jnp.dot(w_ref[...], imcol,
                    preferred_element_type=jnp.float32,
                    precision=lax.Precision.HIGHEST)
        o_ref[0] = y + b_ref[...]                           # unmasked vst

    return kernel


# ------------------------------ wrapper --------------------------------------

def _phys_bytes(shape, dtype):
    """Approx physical VMEM footprint of one array under (8,128) tiling."""
    itemsize = jnp.dtype(dtype).itemsize
    if len(shape) < 2:
        return max(512, int(np.prod(shape, dtype=np.int64)) * itemsize)
    sub = 8 * max(1, 4 // itemsize)
    lead = int(np.prod(shape[:-2], dtype=np.int64)) if len(shape) > 2 else 1
    return int(lead * (-(-int(shape[-2]) // sub) * sub)
               * (-(-int(shape[-1]) // 128) * 128) * itemsize)


def resize_conv2d(x, weight, bias, *, scale_factor, mode="nearest"):
    """Pallas TPU implementation of ResizeConv2d.forward.

    x:      (B, Cin, H, W)    f32, NCHW (PyTorch layout)
    weight: (Cout, Cin, K, K) f32, PyTorch Conv2d (OIHW) layout
    bias:   (Cout,)           f32
    Returns (B, Cout, H*s + 3 - K, W*s + 3 - K) f32 (stride=1, padding=1).
    """
    # TODO(synk): only mode='nearest' with an integer scale_factor is
    # implemented (the configuration the autoencoder uses).
    assert mode == "nearest"
    s = int(scale_factor)
    assert s == scale_factor and s >= 1

    B, Cin, H, W = x.shape
    Cout, Cin_w, Kh, Kw = weight.shape
    assert Cin_w == Cin and Kh == Kw
    K = Kh
    # TODO(synk): kernel_size < 3 with the module's fixed padding=1 not implemented.
    assert K >= 3
    Hs, Ws = H * s, W * s
    Ho, Wo = Hs + 3 - K, Ws + 3 - K            # stride=1, padding=1
    HW = H * W
    Cin_p = -(-Cin // 8) * 8                   # sublane-align the channel dim
    PP = s * s * Cout                          # all s*s output phases at once

    # Source-offset window after folding the upsample into the conv:
    # tap dy of output phase ph reads source row h' + (ph + dy - 1)//s.
    dmax = (s + K - 3) // s
    Kp = dmax + 2                              # offsets dh, dw in {-1, ..., dmax}
    offs = [(dh, dw) for dh in range(-1, dmax + 1) for dw in range(-1, dmax + 1)]
    KKC = Kp * Kp * Cin_p

    # ---- phase-folded weight matrix (exact f32 sums of the original taps) ----
    # A[p, dy, d] = 1  iff  (p + dy - 1) // s == d - 1
    A = np.zeros((s, K, Kp), np.float32)
    for p in range(s):
        for dy in range(K):
            A[p, dy, (p + dy - 1) // s + 1] = 1.0
    A = jnp.asarray(A)
    w_f32 = weight.astype(jnp.float32)
    if Cin_p != Cin:
        w_f32 = jnp.pad(w_f32, ((0, 0), (0, Cin_p - Cin), (0, 0), (0, 0)))
    # Wmat[(ph,pw,co), (dh,dw,ci)]; HIGHEST so the folding sums stay exact f32.
    w_mat = jnp.einsum("pyd,ocyx,qxe->pqodec", A, w_f32, A,
                       precision=lax.Precision.HIGHEST).reshape(PP, KKC)
    bias_rows = jnp.tile(bias.astype(jnp.float32), s * s).reshape(PP, 1)

    # ---- 0/1 validity masks (zero padding) per source offset, flat (h',w') ---
    hh, ww = np.meshgrid(np.arange(H), np.arange(W), indexing="ij")
    hh, ww = hh.reshape(-1), ww.reshape(-1)
    masks = np.stack(
        [((hh + dh >= 0) & (hh + dh < H) & (ww + dw >= 0) & (ww + dw < W))
         for (dh, dw) in offs], axis=0).astype(np.float32)        # (Kp*Kp, HW)
    masks = jnp.asarray(masks)

    # ---- flat, channel-padded activation.  Kept f32 for a tight numerical
    #      match; at production channel counts cast to bf16 here instead. -----
    x_flat = x.astype(jnp.float32).reshape(B, Cin, HW)
    if Cin_p != Cin:
        x_flat = jnp.pad(x_flat, ((0, 0), (0, Cin_p - Cin), (0, 0)))

    kernel = _make_kernel(W, HW, offs)

    # ---- VMEM budget: real per-step working set + headroom, capped at 48 MiB -
    ws = (2 * _phys_bytes((1, Cin_p, HW), jnp.float32)            # x block (x2 buf)
          + 2 * _phys_bytes((1, PP, HW), jnp.float32)             # out block (x2 buf)
          + _phys_bytes((PP, KKC), jnp.float32)                   # weights
          + _phys_bytes((PP, 1), jnp.float32)                     # bias
          + _phys_bytes((Kp * Kp, HW), jnp.float32)               # masks
          + (Kp * Kp + 1) * _phys_bytes((Cin_p, HW), jnp.float32)  # rolled cols
          + _phys_bytes((KKC, HW), jnp.float32)                   # im2col
          + _phys_bytes((PP, HW), jnp.float32))                   # matmul result
    vmem_limit = int(min(48 << 20, max(8 << 20, 2 * ws)))

    y = pl.pallas_call(
        kernel,
        out_shape=jax.ShapeDtypeStruct((B, PP, HW), jnp.float32),
        grid=(B,),
        in_specs=[
            pl.BlockSpec((1, Cin_p, HW), lambda b: (b, 0, 0)),    # activation
            pl.BlockSpec((PP, KKC), lambda b: (0, 0)),            # weights
            pl.BlockSpec((PP, 1), lambda b: (0, 0)),              # bias
            pl.BlockSpec((Kp * Kp, HW), lambda b: (0, 0)),        # masks
        ],
        out_specs=pl.BlockSpec((1, PP, HW), lambda b: (b, 0, 0)),
        compiler_params=pltpu.CompilerParams(
            dimension_semantics=("parallel",),
            vmem_limit_bytes=vmem_limit),
    )(x_flat, w_mat, bias_rows, masks)

    # (B, (ph,pw,co), h'*W+w') -> NCHW, un-interleaving the s*s output phases.
    y = y.reshape(B, s, s, Cout, H, W)
    y = jnp.transpose(y, (0, 3, 4, 1, 5, 2)).reshape(B, Cout, Hs, Ws)
    return y[:, :, :Ho, :Wo]


# --------------------------------- main ---------------------------------------

if __name__ == "__main__":
    key = jax.random.PRNGKey(0)
    kx, kw, kb = jax.random.split(key, 3)

    B, Cin, H, W = 2, 4, 16, 16
    Cout, K, s = 8, 3, 2

    x = jax.random.normal(kx, (B, Cin, H, W), jnp.float32)
    weight = jax.random.normal(kw, (Cout, Cin, K, K), jnp.float32) / math.sqrt(K * K * Cin)
    bias = 0.1 * jax.random.normal(kb, (Cout,), jnp.float32)

    @jax.jit
    def fwd(x_):
        return resize_conv2d(x_, weight, bias, scale_factor=s, mode="nearest")

    out = jax.block_until_ready(fwd(x))

    Hs, Ws = H * s, W * s
    Ho, Wo = Hs + 3 - K, Ws + 3 - K            # general formula (stride=1, pad=1)
    assert out.shape == (B, Cout, Ho, Wo), out.shape
    assert bool(jnp.all(jnp.isfinite(out)))

    # f32 XLA reference: nearest upsample (= repeat for integer s) + conv + bias.
    # Both sides are f32 end-to-end now, so the tolerance is tight.
    xu = jnp.repeat(jnp.repeat(x, s, axis=2), s, axis=3)
    ref = lax.conv_general_dilated(
        xu, weight, window_strides=(1, 1), padding=((1, 1), (1, 1)),
        dimension_numbers=("NCHW", "OIHW", "NCHW"),
        precision=lax.Precision.HIGHEST)
    ref = ref + bias.reshape(1, Cout, 1, 1)
    max_err = float(jnp.max(jnp.abs(out - ref)))
    assert bool(jnp.allclose(out, ref, atol=1e-3, rtol=1e-3)), max_err

    print("KERNEL_OK")
</pallas_src>

<mosaic_0001>
module attributes {stable_mosaic.version = 11 : i64} {
  func.func @kernel(%arg0: i32, %arg1: memref<1x8x256xf32, #tpu.memory_space<vmem>>, %arg2: memref<32x72xf32, #tpu.memory_space<vmem>>, %arg3: memref<32x1xf32, #tpu.memory_space<vmem>>, %arg4: memref<9x256xf32, #tpu.memory_space<vmem>>, %arg5: memref<1x32x256xf32, #tpu.memory_space<vmem>>) attributes {dimension_semantics = [#tpu.dimension_semantics<parallel>], iteration_bounds = array<i64: 2>, scalar_prefetch = 0 : i64, scratch_operands = 0 : i64, tpu.core_type = #tpu.core_type<tc>, window_params = [{transform_indices = @transform_0, window_bounds = array<i64: 1, 8, 256>}, {pipeline_mode = #tpu.pipeline_mode<synchronous>, transform_indices = @transform_1, window_bounds = array<i64: 32, 72>}, {pipeline_mode = #tpu.pipeline_mode<synchronous>, transform_indices = @transform_2, window_bounds = array<i64: 32, 1>}, {pipeline_mode = #tpu.pipeline_mode<synchronous>, transform_indices = @transform_3, window_bounds = array<i64: 9, 256>}, {transform_indices = @transform_4, window_bounds = array<i64: 1, 32, 256>}]} {
    %c0 = arith.constant 0 : index
    %c0_0 = arith.constant 0 : index
    %c0_1 = arith.constant 0 : index
    %0 = vector.load %arg1[%c0, %c0_0, %c0_1] : memref<1x8x256xf32, #tpu.memory_space<vmem>>, vector<1x8x256xf32>
    %1 = vector.shape_cast %0 : vector<1x8x256xf32> to vector<8x256xf32>
    %c17_i32 = arith.constant 17 : i32
    %2 = tpu.dynamic_rotate %1 by %c17_i32 dim 1 : vector<8x256xf32>, i32 -> vector<8x256xf32>
    %c0_2 = arith.constant 0 : index
    %c0_3 = arith.constant 0 : index
    %3 = vector.load %arg4[%c0_2, %c0_3] : memref<9x256xf32, #tpu.memory_space<vmem>>, vector<1x256xf32>
    %4 = vector.broadcast %3 : vector<1x256xf32> to vector<8x256xf32>
    %5 = arith.mulf %2, %4 : vector<8x256xf32>
    %c16_i32 = arith.constant 16 : i32
    %6 = tpu.dynamic_rotate %1 by %c16_i32 dim 1 : vector<8x256xf32>, i32 -> vector<8x256xf32>
    %c1 = arith.constant 1 : index
    %c0_4 = arith.constant 0 : index
    %7 = vector.load %arg4[%c1, %c0_4] : memref<9x256xf32, #tpu.memory_space<vmem>>, vector<1x256xf32>
    %8 = vector.broadcast %7 : vector<1x256xf32> to vector<8x256xf32>
    %9 = arith.mulf %6, %8 : vector<8x256xf32>
    %c15_i32 = arith.constant 15 : i32
    %10 = tpu.dynamic_rotate %1 by %c15_i32 dim 1 : vector<8x256xf32>, i32 -> vector<8x256xf32>
    %c2 = arith.constant 2 : index
    %c0_5 = arith.constant 0 : index
    %11 = vector.load %arg4[%c2, %c0_5] : memref<9x256xf32, #tpu.memory_space<vmem>>, vector<1x256xf32>
    %12 = vector.broadcast %11 : vector<1x256xf32> to vector<8x256xf32>
    %13 = arith.mulf %10, %12 : vector<8x256xf32>
    %c1_i32 = arith.constant 1 : i32
    %14 = tpu.dynamic_rotate %1 by %c1_i32 dim 1 : vector<8x256xf32>, i32 -> vector<8x256xf32>
    %c3 = arith.constant 3 : index
    %c0_6 = arith.constant 0 : index
    %15 = vector.load %arg4[%c3, %c0_6] : memref<9x256xf32, #tpu.memory_space<vmem>>, vector<1x256xf32>
    %16 = vector.broadcast %15 : vector<1x256xf32> to vector<8x256xf32>
    %17 = arith.mulf %14, %16 : vector<8x256xf32>
    %c255_i32 = arith.constant 255 : i32
    %18 = tpu.dynamic_rotate %1 by %c255_i32 dim 1 : vector<8x256xf32>, i32 -> vector<8x256xf32>
    %c5 = arith.constant 5 : index
    %c0_7 = arith.constant 0 : index
    %19 = vector.load %arg4[%c5, %c0_7] : memref<9x256xf32, #tpu.memory_space<vmem>>, vector<1x256xf32>
    %20 = vector.broadcast %19 : vector<1x256xf32> to vector<8x256xf32>
    %21 = arith.mulf %18, %20 : vector<8x256xf32>
    %c241_i32 = arith.constant 241 : i32
    %22 = tpu.dynamic_rotate %1 by %c241_i32 dim 1 : vector<8x256xf32>, i32 -> vector<8x256xf32>
    %c6 = arith.constant 6 : index
    %c0_8 = arith.constant 0 : index
    %23 = vector.load %arg4[%c6, %c0_8] : memref<9x256xf32, #tpu.memory_space<vmem>>, vector<1x256xf32>
    %24 = vector.broadcast %23 : vector<1x256xf32> to vector<8x256xf32>
    %25 = arith.mulf %22, %24 : vector<8x256xf32>
    %c240_i32 = arith.constant 240 : i32
    %26 = tpu.dynamic_rotate %1 by %c240_i32 dim 1 : vector<8x256xf32>, i32 -> vector<8x256xf32>
    %c7 = arith.constant 7 : index
    %c0_9 = arith.constant 0 : index
    %27 = vector.load %arg4[%c7, %c0_9] : memref<9x256xf32, #tpu.memory_space<vmem>>, vector<1x256xf32>
    %28 = vector.broadcast %27 : vector<1x256xf32> to vector<8x256xf32>
    %29 = arith.mulf %26, %28 : vector<8x256xf32>
    %c239_i32 = arith.constant 239 : i32
    %30 = tpu.dynamic_rotate %1 by %c239_i32 dim 1 : vector<8x256xf32>, i32 -> vector<8x256xf32>
    %c8 = arith.constant 8 : index
    %c0_10 = arith.constant 0 : index
    %31 = vector.load %arg4[%c8, %c0_10] : memref<9x256xf32, #tpu.memory_space<vmem>>, vector<1x256xf32>
    %32 = vector.broadcast %31 : vector<1x256xf32> to vector<8x256xf32>
    %33 = arith.mulf %30, %32 : vector<8x256xf32>
    %34 = tpu.concatenate %5, %9, %13, %17, %1, %21, %25, %29, %33 in 0 : vector<8x256xf32>, vector<8x256xf32>, vector<8x256xf32>, vector<8x256xf32>, vector<8x256xf32>, vector<8x256xf32>, vector<8x256xf32>, vector<8x256xf32>, vector<8x256xf32> -> vector<72x256xf32>
    %c0_11 = arith.constant 0 : index
    %c0_12 = arith.constant 0 : index
    %35 = vector.load %arg2[%c0_11, %c0_12] : memref<32x72xf32, #tpu.memory_space<vmem>>, vector<32x72xf32>
    %cst = arith.constant dense<0.000000e+00> : vector<32x256xf32>
    %36 = tpu.matmul %35, %34, %cst {dimension_numbers = #tpu.dot_dimension_numbers<[1], [0], [0], [1], [0, 0, 1, 1], [], []>, precision = #tpu.contract_precision<fp32>} : vector<32x72xf32>, vector<72x256xf32>, vector<32x256xf32> -> vector<32x256xf32>
    %c0_13 = arith.constant 0 : index
    %c0_14 = arith.constant 0 : index
    %37 = vector.load %arg3[%c0_13, %c0_14] : memref<32x1xf32, #tpu.memory_space<vmem>>, vector<32x1xf32>
    %38 = vector.broadcast %37 : vector<32x1xf32> to vector<32x256xf32>
    %39 = arith.addf %36, %38 : vector<32x256xf32>
    %c0_15 = arith.constant 0 : index
    %c0_16 = arith.constant 0 : index
    %c0_17 = arith.constant 0 : index
    %40 = vector.load %arg5[%c0_15, %c0_16, %c0_17] : memref<1x32x256xf32, #tpu.memory_space<vmem>>, vector<1x32x256xf32>
    %41 = vector.shape_cast %40 : vector<1x32x256xf32> to vector<32x256xf32>
    %42 = vector.shape_cast %39 : vector<32x256xf32> to vector<1x32x256xf32>
    tpu.vector_store %arg5[%c0_15, %c0_16, %c0_17], %42 {strides = array<i32>} : memref<1x32x256xf32, #tpu.memory_space<vmem>>, vector<1x32x256xf32>,
    return
  }
  func.func @transform_0(%arg0: i32) -> (i32, i32, i32) {
    %c0_i32 = arith.constant 0 : i32
    %c0_i32_0 = arith.constant 0 : i32
    %c0_i32_1 = arith.constant 0 : i32
    return %arg0, %c0_i32, %c0_i32_0 : i32, i32, i32
  }
  func.func @transform_1(%arg0: i32) -> (i32, i32) {
    %c0_i32 = arith.constant 0 : i32
    %c0_i32_0 = arith.constant 0 : i32
    %c0_i32_1 = arith.constant 0 : i32
    return %c0_i32, %c0_i32_0 : i32, i32
  }
  func.func @transform_2(%arg0: i32) -> (i32, i32) {
    %c0_i32 = arith.constant 0 : i32
    %c0_i32_0 = arith.constant 0 : i32
    %c0_i32_1 = arith.constant 0 : i32
    return %c0_i32, %c0_i32_0 : i32, i32
  }
  func.func @transform_3(%arg0: i32) -> (i32, i32) {
    %c0_i32 = arith.constant 0 : i32
    %c0_i32_0 = arith.constant 0 : i32
    %c0_i32_1 = arith.constant 0 : i32
    return %c0_i32, %c0_i32_0 : i32, i32
  }
  func.func @transform_4(%arg0: i32) -> (i32, i32, i32) {
    %c0_i32 = arith.constant 0 : i32
    %c0_i32_0 = arith.constant 0 : i32
    %c0_i32_1 = arith.constant 0 : i32
    return %arg0, %c0_i32, %c0_i32_0 : i32, i32, i32
  }
}

</mosaic_0001>

<llo_original>
// kernel: tile.6
$region0: #{tile.6}
  #allocation0 [shape = 's32[1]{0}', space=sflag, size = 0x4, scoped, tag = 'scoped memory for tile.6']
  %s0 = inlined_call_operand.vmem [shape: f32[8], index: 0, kind: input, shape index: {}]
  %s1 = inlined_call_operand.vmem [shape: f32[4,8], index: 1, kind: output, shape index: {}]
  // Predicated region
  $region2: #{tile.6} parent=0 // pred_check
    _
  $region3: #{tile.6} parent=0 // pred_check_branch
    %3 = sbr.rel (0) target = $region5
  $region4: #{tile.6} parent=0 // pred_region
    _
  $region5: #{tile.6} parent=0 // pred_fallthru
    _
  %v4 = vld [vmem:[%s0] ss:$0 sm:$0xff]
  %5 = vst [vmem:[%s1] sm:$0xf] %v4

// kernel: tile.0
$region0: #{tile.0}
  %s0 = inlined_call_operand.vmem [shape: f32[4,8], index: 0, kind: input, shape index: {}]
  %s1 = inlined_call_operand.vmem [shape: f32[32,1], index: 1, kind: output, shape index: {}]
  $region1: #{tile.0} parent=0
    #allocation0 [shape = 'u8[4096]{0}', space=vmem, size = 0x1000, scoped, tag = 'scoped mem for input reshape']
    %s3 = sshll.u32 1, 4
    %s4 = ssub.s32 %s3, 1
    %v5 = vld [vmem:[%s0] sm:%s4]
    %6 = vst [vmem:[#allocation0] sm:%s4] %v5
    %v7 = vld [vmem:[#allocation0] sm:$0xf]
    %vm8 = vcmask 7168
    %9 = vst.msk [vmem:[%s1] ss:$8 sm:$0xf] %vm8, %v7
    %v10 = vld [vmem:[#allocation0] sm:$0xf]
    %11 = vrot.lane.b32.xlu0 %v10, 127
    %v12 = vpop.permute.xlu0 %11
    %vm13 = vcmask 7168
    %s14 = scalar_lea.vmem %s1, 1
    %15 = vst.msk [vmem:[%s14] ss:$8 sm:$0xf] %vm13, %v12
    %v16 = vld [vmem:[#allocation0] sm:$0xf]
    %17 = vrot.lane.b32.xlu0 %v16, 126
    %v18 = vpop.permute.xlu0 %17
    %vm19 = vcmask 7168
    %s20 = scalar_lea.vmem %s1, 2
    %21 = vst.msk [vmem:[%s20] ss:$8 sm:$0xf] %vm19, %v18
    %v22 = vld [vmem:[#allocation0] sm:$0xf]
    %23 = vrot.lane.b32.xlu0 %v22, 125
    %v24 = vpop.permute.xlu0 %23
    %vm25 = vcmask 7168
    %s26 = scalar_lea.vmem %s1, 3
    %27 = vst.msk [vmem:[%s26] ss:$8 sm:$0xf] %vm25, %v24
    %v28 = vld [vmem:[#allocation0] sm:$0xf]
    %29 = vrot.lane.b32.xlu0 %v28, 124
    %v30 = vpop.permute.xlu0 %29
    %vm31 = vcmask 7168
    %s32 = scalar_lea.vmem %s1, 4
    %33 = vst.msk [vmem:[%s32] ss:$8 sm:$0xf] %vm31, %v30
    %v34 = vld [vmem:[#allocation0] sm:$0xf]
    %35 = vrot.lane.b32.xlu0 %v34, 123
    %v36 = vpop.permute.xlu0 %35
    %vm37 = vcmask 7168
    %s38 = scalar_lea.vmem %s1, 5
    %39 = vst.msk [vmem:[%s38] ss:$8 sm:$0xf] %vm37, %v36
    %v40 = vld [vmem:[#allocation0] sm:$0xf]
    %41 = vrot.lane.b32.xlu0 %v40, 122
    %v42 = vpop.permute.xlu0 %41
    %vm43 = vcmask 7168
    %s44 = scalar_lea.vmem %s1, 6
    %45 = vst.msk [vmem:[%s44] ss:$8 sm:$0xf] %vm43, %v42
    %v46 = vld [vmem:[#allocation0] sm:$0xf]
    %47 = vrot.lane.b32.xlu0 %v46, 121
    %v48 = vpop.permute.xlu0 %47
    %vm49 = vcmask 7168
    %s50 = scalar_lea.vmem %s1, 7
    %51 = vst.msk [vmem:[%s50] ss:$8 sm:$0xf] %vm49, %v48

// kernel: fwd.1
$region0: #{fwd.1}
  #allocation0 [shape = 'u32[]', space=smem, size = 0x4, offset = 0x4, fixed_abs, tag = 'smem constant byte address 0x4 - core index']
  #allocation1 [shape = 'u32[144,128]{1,0:T(1,128)}', space=vmem, size = 0x12000, scoped, tag = 'internal scratch']
  %s0 = inlined_call_operand.vmem [shape: f32[2,8,256], index: 0, kind: input, shape index: {}]
  %s1 = inlined_call_operand.vmem [shape: f32[32,72], index: 1, kind: input, shape index: {}]
  %s2 = inlined_call_operand.vmem [shape: f32[32,1], index: 2, kind: input, shape index: {}]
  %s3 = inlined_call_operand.vmem [shape: f32[9,256], index: 3, kind: input, shape index: {}]
  %s4 = inlined_call_operand.vmem [shape: f32[2,32,256], index: 4, kind: output, shape index: {}]
  %s5 = sld [smem:[#allocation0]]
  $region49: #{fwd.1} parent=0
    _
  %s7 = ssub.s32 1, %s5
  %s8 = scalar_select 0, %s7, %s5
  loop: start=0, step=1, limit=4
  $region2: #{fwd.1} parent=0 // loop_pre_header
    _
  $region3: #{fwd.1} parent=0 // loop_header
    %s10 = sphi 0, %s14
    %p11 = scmp.ge.s32.totalorder %s10, 4
    %s20 = sphi 0, %s22
    %s23 = sphi 0, %s20
    %s24 = sphi 0, %s23
    %s40 = sphi 0, %s24
    %s44 = sphi 0, %s44
    %s46 = sphi 0, %s44
    %s47 = sphi 0, %s46
    %s61 = sphi 0, %s47
    %s65 = sphi 0, %s65
    %s67 = sphi 0, %s65
    %s68 = sphi 0, %s67
    %s82 = sphi 0, %s68
    %s86 = sphi 0, %s86
    %s88 = sphi 0, %s86
    %s89 = sphi 0, %s88
    %s103 = sphi 0, %s89
    %s109 = sphi 0, %s111
    %s112 = sphi 0, %s109
    %s113 = sphi 0, %s112
    %s129 = sphi 0, %s113
  $region4: #{fwd.1} parent=0 // loop_header_branch
    %13 = sbr.rel (%p11) target = $region8
  $region5: #{fwd.1} parent=0 // loop_body
    %s15 = ssub.s32 %s10, 1
    %s16 = ssub.s32 %s10, 2
    %s17 = sadd.s32 %s10, 1
    %s18 = ssub.s32 %s10, %s17
    %p19 = scmp.eq.s32.totalorder %s18, 0
    %s21 = sadd.s32 %s20, 1
    %s22 = scalar_select %p19, %s20, %s21
    %p25 = pneg %p19
    %p26 = scmp.eq.s32.totalorder %s10, 1
    %p27 = por %p25, %p26
    %p28 = scmp.ne.s32.totalorder %s20, %s23
    %p29 = scmp.eq.s32.totalorder %s10, 0
    %p30 = por %p28, %p29
    %p31 = scmp.ne.s32.totalorder %s20, %s23
    %p32 = scmp.eq.s32.totalorder %s15, 1
    %p33 = por %p31, %p32
    %p34 = scmp.ne.s32.totalorder %s23, %s24
    %p35 = scmp.eq.s32.totalorder %s15, 0
    %p36 = por %p34, %p35
    %p37 = scmp.ne.s32.totalorder %s23, %s24
    %p38 = scmp.eq.s32.totalorder %s16, 1
    %p39 = por %p37, %p38
    %p41 = scmp.ne.s32.totalorder %s24, %s40
    %p42 = scmp.eq.s32.totalorder %s16, 0
    %p43 = por %p41, %p42
    %s45 = sadd.s32 %s44, 1
    %p48 = scmp.eq.s32.totalorder %s10, 1
    %p49 = scmp.ne.s32.totalorder %s44, %s46
    %p50 = scmp.eq.s32.totalorder %s10, 0
    %p51 = por %p49, %p50
    %p52 = scmp.ne.s32.totalorder %s44, %s46
    %p53 = scmp.eq.s32.totalorder %s15, 1
    %p54 = por %p52, %p53
    %p55 = scmp.ne.s32.totalorder %s46, %s47
    %p56 = scmp.eq.s32.totalorder %s15, 0
    %p57 = por %p55, %p56
    %p58 = scmp.ne.s32.totalorder %s46, %s47
    %p59 = scmp.eq.s32.totalorder %s16, 1
    %p60 = por %p58, %p59
    %p62 = scmp.ne.s32.totalorder %s47, %s61
    %p63 = scmp.eq.s32.totalorder %s16, 0
    %p64 = por %p62, %p63
    %s66 = sadd.s32 %s65, 1
    %p69 = scmp.eq.s32.totalorder %s10, 1
    %p70 = scmp.ne.s32.totalorder %s65, %s67
    %p71 = scmp.eq.s32.totalorder %s10, 0
    %p72 = por %p70, %p71
    %p73 = scmp.ne.s32.totalorder %s65, %s67
    %p74 = scmp.eq.s32.totalorder %s15, 1
    %p75 = por %p73, %p74
    %p76 = scmp.ne.s32.totalorder %s67, %s68
    %p77 = scmp.eq.s32.totalorder %s15, 0
    %p78 = por %p76, %p77
    %p79 = scmp.ne.s32.totalorder %s67, %s68
    %p80 = scmp.eq.s32.totalorder %s16, 1
    %p81 = por %p79, %p80
    %p83 = scmp.ne.s32.totalorder %s68, %s82
    %p84 = scmp.eq.s32.totalorder %s16, 0
    %p85 = por %p83, %p84
    %s87 = sadd.s32 %s86, 1
    %p90 = scmp.eq.s32.totalorder %s10, 1
    %p91 = scmp.ne.s32.totalorder %s86, %s88
    %p92 = scmp.eq.s32.totalorder %s10, 0
    %p93 = por %p91, %p92
    %p94 = scmp.ne.s32.totalorder %s86, %s88
    %p95 = scmp.eq.s32.totalorder %s15, 1
    %p96 = por %p94, %p95
    %p97 = scmp.ne.s32.totalorder %s88, %s89
    %p98 = scmp.eq.s32.totalorder %s15, 0
    %p99 = por %p97, %p98
    %p100 = scmp.ne.s32.totalorder %s88, %s89
    %p101 = scmp.eq.s32.totalorder %s16, 1
    %p102 = por %p100, %p101
    %p104 = scmp.ne.s32.totalorder %s89, %s103
    %p105 = scmp.eq.s32.totalorder %s16, 0
    %p106 = por %p104, %p105
    %s107 = ssub.s32 %s10, %s17
    %p108 = scmp.eq.s32.totalorder %s107, 0
    %s110 = sadd.s32 %s109, 1
    %s111 = scalar_select %p108, %s109, %s110
    %p114 = pneg %p108
    %p115 = scmp.eq.s32.totalorder %s10, 1
    %p116 = por %p114, %p115
    %p117 = scmp.ne.s32.totalorder %s109, %s112
    %p118 = scmp.eq.s32.totalorder %s10, 0
    %p119 = por %p117, %p118
    %p120 = scmp.ne.s32.totalorder %s109, %s112
    %p121 = scmp.eq.s32.totalorder %s15, 1
    %p122 = por %p120, %p121
    %p123 = scmp.ne.s32.totalorder %s112, %s113
    %p124 = scmp.eq.s32.totalorder %s15, 0
    %p125 = por %p123, %p124
    %p126 = scmp.ne.s32.totalorder %s112, %s113
    %p127 = scmp.eq.s32.totalorder %s16, 1
    %p128 = por %p126, %p127
    %p130 = scmp.ne.s32.totalorder %s113, %s129
    %p131 = scmp.eq.s32.totalorder %s16, 0
    %p132 = por %p130, %p131
    %p133 = scmp.le.s32.totalorder 1, %s10
    %p134 = scmp.lt.s32.totalorder %s10, 3
    %p135 = pnand %p133, %p134
    %p136 = pneg %p135
    // Predicated region
    $region9: #{fwd.1} parent=5 // pred_check
      _
    $region10: #{fwd.1} parent=5 // pred_check_branch
      %138 = sbr.rel (%p135) target = $region12
    $region11: #{fwd.1} parent=5 // pred_region
      %s139 = ssub.s32 %s10, 1
      // Predicated region
      $region13: #{fwd.1} parent=11 // pred_check
        %p140 = pneg %p57
      $region14: #{fwd.1} parent=11 // pred_check_branch
        %142 = sbr.rel (%p140) target = $region16
      $region15: #{fwd.1} parent=11 // pred_region
        _
      $region16: #{fwd.1} parent=11 // pred_fallthru
        _
      // Predicated region
      $region17: #{fwd.1} parent=11 // pred_check
        %p143 = pneg %p78
      $region18: #{fwd.1} parent=11 // pred_check_branch
        %145 = sbr.rel (%p143) target = $region20
      $region19: #{fwd.1} parent=11 // pred_region
        _
      $region20: #{fwd.1} parent=11 // pred_fallthru
        _
      // Predicated region
      $region21: #{fwd.1} parent=11 // pred_check
        %p146 = pneg %p99
      $region22: #{fwd.1} parent=11 // pred_check_branch
        %148 = sbr.rel (%p146) target = $region24
      $region23: #{fwd.1} parent=11 // pred_region
        _
      $region24: #{fwd.1} parent=11 // pred_fallthru
        _
    $region12: #{fwd.1} parent=5 // pred_fallthru
      _
    %p149 = scmp.lt.s32.totalorder %s10, 2
    // Predicated region
    $region25: #{fwd.1} parent=5 // pred_check
      %p150 = pneg %p149
    $region26: #{fwd.1} parent=5 // pred_check_branch
      %152 = sbr.rel (%p150) target = $region28
    $region27: #{fwd.1} parent=5 // pred_region
      // Predicated region
      $region29: #{fwd.1} parent=27 // pred_check
        %p153 = pneg %p30
      $region30: #{fwd.1} parent=27 // pred_check_branch
        %155 = sbr.rel (%p153) target = $region32
      $region31: #{fwd.1} parent=27 // pred_region
        %p156 = scmp.lt.s32.totalorder %s10, 1
        %s157 = scalar_select %p156, %s10, 1
        %s158 = smul.addr %s157, 2
        %s159 = smul.addr %s158, 8
        %s160 = scalar_lea.vmem %s0, %s159
      $region32: #{fwd.1} parent=27 // pred_fallthru
        _
    $region28: #{fwd.1} parent=5 // pred_fallthru
      _
    %p161 = scmp.le.s32.totalorder 1, %s10
    %p162 = scmp.lt.s32.totalorder %s10, 3
    %p163 = pnand %p161, %p162
    %p164 = pneg %p163
    // Predicated region
    $region33: #{fwd.1} parent=5 // pred_check
      _
    $region34: #{fwd.1} parent=5 // pred_check_branch
      %166 = sbr.rel (%p163) target = $region36
    $region35: #{fwd.1} parent=5 // pred_region
      %s167 = ssub.s32 %s10, 1
      %p168 = scmp.lt.s32.totalorder %s15, 1
      %s169 = scalar_select %p168, %s15, 1
      %s170 = smul.addr %s169, 2
      %s171 = smul.addr %s170, 8
      %s172 = scalar_lea.vmem %s0, %s171
      %p173 = pneg %p36
      %p174 = pneg %p33
      %p175 = pneg %p57
      %p176 = pneg %p54
      %p177 = pneg %p78
      %p178 = pneg %p75
      %p179 = pneg %p99
      %p180 = pneg %p96
      %p181 = pneg %p125
      %p182 = pneg %p122
      %p183 = scmp.lt.s32.totalorder %s15, 1
      %s184 = scalar_select %p183, %s15, 1
      %s185 = smul.addr %s184, 8
      %s186 = smul.addr %s185, 8
      %s187 = scalar_lea.vmem %s4, %s186
      %p188 = scmp.lt.s32.totalorder %s15, 1
      %s189 = scalar_select %p188, %s15, 1
      %s190 = smul.addr %s189, 2
      %s191 = smul.addr %s190, 8
      %s192 = scalar_lea.vmem %s0, %s191
      %p193 = scmp.lt.s32.totalorder %s15, 1
      %s194 = scalar_select %p193, %s15, 1
      %s195 = smul.addr %s194, 8
      %s196 = smul.addr %s195, 8
      %s197 = scalar_lea.vmem %s4, %s196
      %v198 = vld [vmem:[%s192] sm:$0xff]
      %v199 = vld [vmem:[%s192 + $0x8] sm:$0xff]
      %200 = vrot.lane.b32.xlu0 %v198, 17
      %v201 = vpop.permute.xlu0 %200
      %202 = vrot.lane.b32.xlu0 %v199, 17
      %v203 = vpop.permute.xlu0 %202
      %v204 = vlaneseq
      %v205 = vand.u32 %v204, 127
      %vm206 = vcmp.lt.s32.totalorder %v205, 17
      %v207 = vsel %vm206, %v201, %v203
      %v208 = vsel %vm206, %v203, %v201
      %v209 = vld [vmem:[%s3] ss:$8 sm:$0x3]
      %v211 = vlaneseq
      %v212 = vshrl.u32 %v211, 7
      %v213 = vsub.s32 0, %v212
      %v214 = vrot.slane %v209, %v213
      %v215 = vlaneseq
      %v216 = vshrl.u32 %v215, 7
      %v217 = vsub.s32 1, %v216
      %v218 = vrot.slane %v209, %v217
      %v221 = vmul.f32 %v208, %v214
      %v222 = vmul.f32 %v207, %v218
      %223 = vrot.lane.b32.xlu0 %v198, 16
      %v224 = vpop.permute.xlu0 %223
      %225 = vrot.lane.b32.xlu0 %v199, 16
      %v226 = vpop.permute.xlu0 %225
      %vm227 = vcmp.lt.s32.totalorder %v205, 16
      %v228 = vsel %vm227, %v224, %v226
      %v229 = vsel %vm227, %v226, %v224
      %s230 = scalar_lea.vmem %s3, 1
      %v231 = vld [vmem:[%s230] ss:$8 sm:$0x3]
      %v233 = vlaneseq
      %v234 = vshrl.u32 %v233, 7
      %v235 = vsub.s32 0, %v234
      %v236 = vrot.slane %v231, %v235
      %v237 = vlaneseq
      %v238 = vshrl.u32 %v237, 7
      %v239 = vsub.s32 1, %v238
      %v240 = vrot.slane %v231, %v239
      %v243 = vmul.f32 %v229, %v236
      %v244 = vmul.f32 %v228, %v240
      %245 = vrot.lane.b32.xlu0 %v198, 15
      %v246 = vpop.permute.xlu0 %245
      %247 = vrot.lane.b32.xlu0 %v199, 15
      %v248 = vpop.permute.xlu0 %247
      %vm249 = vcmp.lt.s32.totalorder %v205, 15
      %v250 = vsel %vm249, %v246, %v248
      %v251 = vsel %vm249, %v248, %v246
      %s252 = scalar_lea.vmem %s3, 2
      %v253 = vld [vmem:[%s252] ss:$8 sm:$0x3]
      %v255 = vlaneseq
      %v256 = vshrl.u32 %v255, 7
      %v257 = vsub.s32 0, %v256
      %v258 = vrot.slane %v253, %v257
      %v259 = vlaneseq
      %v260 = vshrl.u32 %v259, 7
      %v261 = vsub.s32 1, %v260
      %v262 = vrot.slane %v253, %v261
      %v265 = vmul.f32 %v251, %v258
      %v266 = vmul.f32 %v250, %v262
      %267 = vrot.lane.b32.xlu0 %v198, 1
      %v268 = vpop.permute.xlu0 %267
      %269 = vrot.lane.b32.xlu0 %v199, 1
      %v270 = vpop.permute.xlu0 %269
      %vm271 = vcmp.lt.s32.totalorder %v205, 1
      %v272 = vsel %vm271, %v268, %v270
      %v273 = vsel %vm271, %v270, %v268
      %s274 = scalar_lea.vmem %s3, 3
      %v275 = vld [vmem:[%s274] ss:$8 sm:$0x3]
      %v277 = vlaneseq
      %v278 = vshrl.u32 %v277, 7
      %v279 = vsub.s32 0, %v278
      %v280 = vrot.slane %v275, %v279
      %v281 = vlaneseq
      %v282 = vshrl.u32 %v281, 7
      %v283 = vsub.s32 1, %v282
      %v284 = vrot.slane %v275, %v283
      %v287 = vmul.f32 %v273, %v280
      %v288 = vmul.f32 %v272, %v284
      %289 = vrot.lane.b32.xlu0 %v198, 127
      %v290 = vpop.permute.xlu0 %289
      %291 = vrot.lane.b32.xlu0 %v199, 127
      %v292 = vpop.permute.xlu0 %291
      %vm293 = vcmp.lt.s32.totalorder %v205, 127
      %v294 = vsel %vm293, %v290, %v292
      %v295 = vsel %vm293, %v292, %v290
      %s296 = scalar_lea.vmem %s3, 5
      %v297 = vld [vmem:[%s296] ss:$8 sm:$0x3]
      %v299 = vlaneseq
      %v300 = vshrl.u32 %v299, 7
      %v301 = vsub.s32 0, %v300
      %v302 = vrot.slane %v297, %v301
      %v303 = vlaneseq
      %v304 = vshrl.u32 %v303, 7
      %v305 = vsub.s32 1, %v304
      %v306 = vrot.slane %v297, %v305
      %v309 = vmul.f32 %v294, %v302
      %v310 = vmul.f32 %v295, %v306
      %311 = vrot.lane.b32.xlu0 %v198, 113
      %v312 = vpop.permute.xlu0 %311
      %313 = vrot.lane.b32.xlu0 %v199, 113
      %v314 = vpop.permute.xlu0 %313
      %vm315 = vcmp.lt.s32.totalorder %v205, 113
      %v316 = vsel %vm315, %v312, %v314
      %v317 = vsel %vm315, %v314, %v312
      %s318 = scalar_lea.vmem %s3, 6
      %v319 = vld [vmem:[%s318] ss:$8 sm:$0x3]
      %v321 = vlaneseq
      %v322 = vshrl.u32 %v321, 7
      %v323 = vsub.s32 0, %v322
      %v324 = vrot.slane %v319, %v323
      %v325 = vlaneseq
      %v326 = vshrl.u32 %v325, 7
      %v327 = vsub.s32 1, %v326
      %v328 = vrot.slane %v319, %v327
      %v331 = vmul.f32 %v316, %v324
      %v332 = vmul.f32 %v317, %v328
      %333 = vrot.lane.b32.xlu0 %v198, 112
      %v334 = vpop.permute.xlu0 %333
      %335 = vrot.lane.b32.xlu0 %v199, 112
      %v336 = vpop.permute.xlu0 %335
      %vm337 = vcmp.lt.s32.totalorder %v205, 112
      %v338 = vsel %vm337, %v334, %v336
      %v339 = vsel %vm337, %v336, %v334
      %s340 = scalar_lea.vmem %s3, 7
      %v341 = vld [vmem:[%s340] ss:$8 sm:$0x3]
      %v343 = vlaneseq
      %v344 = vshrl.u32 %v343, 7
      %v345 = vsub.s32 0, %v344
      %v346 = vrot.slane %v341, %v345
      %v347 = vlaneseq
      %v348 = vshrl.u32 %v347, 7
      %v349 = vsub.s32 1, %v348
      %v350 = vrot.slane %v341, %v349
      %v353 = vmul.f32 %v338, %v346
      %v354 = vmul.f32 %v339, %v350
      %355 = vrot.lane.b32.xlu0 %v198, 111
      %v356 = vpop.permute.xlu0 %355
      %357 = vrot.lane.b32.xlu0 %v199, 111
      %v358 = vpop.permute.xlu0 %357
      %vm359 = vcmp.lt.s32.totalorder %v205, 111
      %v360 = vsel %vm359, %v356, %v358
      %v361 = vsel %vm359, %v358, %v356
      %s362 = scalar_lea.vmem %s3, 16
      %v363 = vld [vmem:[%s362] ss:$8 sm:$0x3]
      %v365 = vlaneseq
      %v366 = vshrl.u32 %v365, 7
      %v367 = vsub.s32 0, %v366
      %v368 = vrot.slane %v363, %v367
      %v369 = vlaneseq
      %v370 = vshrl.u32 %v369, 7
      %v371 = vsub.s32 1, %v370
      %v372 = vrot.slane %v363, %v371
      %v375 = vmul.f32 %v360, %v368
      %v376 = vmul.f32 %v361, %v372
      %v377 = vld [vmem:[%s1] sm:$0xff]
      %v378 = vld [vmem:[%s1 + $0x8] sm:$0xff]
      %v379 = vld [vmem:[%s1 + $0x10] sm:$0xff]
      %v380 = vld [vmem:[%s1 + $0x18] sm:$0xff]
      %v381 = vld [vmem:[%s2] sm:$0xff]
      %v382 = vld [vmem:[%s2 + $0x8] sm:$0xff]
      %v383 = vld [vmem:[%s2 + $0x10] sm:$0xff]
      %v384 = vld [vmem:[%s2 + $0x18] sm:$0xff]
      %386 = vset.pattern.permute.xlu0 0
      %387 = vperm.xlu0 %386, %v381
      %v388 = vpop.permute.xlu0 %387
      %391 = vset.pattern.permute.xlu0 0
      %392 = vperm.xlu0 %391, %v382
      %v393 = vpop.permute.xlu0 %392
      %396 = vset.pattern.permute.xlu0 0
      %397 = vperm.xlu0 %396, %v383
      %v398 = vpop.permute.xlu0 %397
      %401 = vset.pattern.permute.xlu0 0
      %402 = vperm.xlu0 %401, %v384
      %v403 = vpop.permute.xlu0 %402
      %vm405 = vcmask 588800
      %v407 = vsel %vm405, %v377, 0
      %v410 = vsel %vm405, %v378, 0
      %v413 = vsel %vm405, %v379, 0
      %v416 = vsel %vm405, %v380, 0
      %418 = vmatprep.subr.mxu0 0.0
      %419 = vmatpush1.msra.mxu0 0.0
      %420 = vmatprep.subr.mxu0 0.0
      %421 = vmatpush1.msra.mxu0 0.0
      %422 = vmatprep.subr.mxu0 0.0
      %423 = vmatpush1.msra.mxu0 0.0
      %424 = vmatprep.subr.mxu0 0.0
      %425 = vmatpush1.msra.mxu0 0.0
      %426 = vmatprep.subr.mxu0 0.0
      %427 = vmatpush1.msra.mxu0 0.0
      %428 = vmatprep.subr.mxu0 0.0
      %429 = vmatpush1.msra.mxu0 0.0
      %430 = vmatprep.subr.mxu0 0.0
      %431 = vmatpush1.msra.mxu0 0.0
      %v432 = vand.u32 %v376, 4294901760
      %433 = vmatprep.subr.mxu0 %v432
      %v434 = vand.u32 %v375, 4294901760
      %435 = vmatpush1.msra.mxu0 %v434
      %v436 = vand.u32 %v354, 4294901760
      %437 = vmatprep.subr.mxu0 %v436
      %v438 = vand.u32 %v353, 4294901760
      %439 = vmatpush1.msra.mxu0 %v438
      %v440 = vand.u32 %v332, 4294901760
      %441 = vmatprep.subr.mxu0 %v440
      %v442 = vand.u32 %v331, 4294901760
      %443 = vmatpush1.msra.mxu0 %v442
      %v444 = vand.u32 %v310, 4294901760
      %445 = vmatprep.subr.mxu0 %v444
      %v446 = vand.u32 %v309, 4294901760
      %447 = vmatpush1.msra.mxu0 %v446
      %v448 = vand.u32 %v199, 4294901760
      %449 = vmatprep.subr.mxu0 %v448
      %v450 = vand.u32 %v198, 4294901760
      %451 = vmatpush1.msra.mxu0 %v450
      %v452 = vand.u32 %v288, 4294901760
      %453 = vmatprep.subr.mxu0 %v452
      %v454 = vand.u32 %v287, 4294901760
      %455 = vmatpush1.msra.mxu0 %v454
      %v456 = vand.u32 %v266, 4294901760
      %457 = vmatprep.subr.mxu0 %v456
      %v458 = vand.u32 %v265, 4294901760
      %459 = vmatpush1.msra.mxu0 %v458
      %v460 = vand.u32 %v244, 4294901760
      %461 = vmatprep.subr.mxu0 %v460
      %v462 = vand.u32 %v243, 4294901760
      %463 = vmatpush1.msra.mxu0 %v462
      %v464 = vand.u32 %v222, 4294901760
      %465 = vmatprep.subr.mxu0 %v464
      %v466 = vand.u32 %v221, 4294901760
      %467 = vmatpush1.msra.mxu0 %v466
      %468 = vmatprep.subr.mxu0 0.0
      %469 = vmatpush2.msra.mxu0 0.0
      %470 = vmatprep.subr.mxu0 0.0
      %471 = vmatpush2.msra.mxu0 0.0
      %472 = vmatprep.subr.mxu0 0.0
      %473 = vmatpush2.msra.mxu0 0.0
      %474 = vmatprep.subr.mxu0 0.0
      %475 = vmatpush2.msra.mxu0 0.0
      %476 = vmatprep.subr.mxu0 0.0
      %477 = vmatpush2.msra.mxu0 0.0
      %478 = vmatprep.subr.mxu0 0.0
      %479 = vmatpush2.msra.mxu0 0.0
      %480 = vmatprep.subr.mxu0 0.0
      %481 = vmatpush2.msra.mxu0 0.0
      %482 = vmatprep.subr.mxu0 0.0
      %483 = vmatpush2.msra.mxu0 0.0
      %484 = vmatprep.subr.mxu0 0.0
      %485 = vmatpush2.msra.mxu0 0.0
      %486 = vmatprep.subr.mxu0 0.0
      %487 = vmatpush2.msra.mxu0 0.0
      %488 = vmatprep.subr.mxu0 0.0
      %489 = vmatpush2.msra.mxu0 0.0
      %490 = vmatprep.subr.mxu0 0.0
      %491 = vmatpush2.msra.mxu0 0.0
      %492 = vmatprep.subr.mxu0 0.0
      %493 = vmatpush2.msra.mxu0 0.0
      %494 = vmatprep.subr.mxu0 0.0
      %495 = vmatpush2.msra.mxu0 0.0
      %496 = vmatprep.subr.mxu0 0.0
      %497 = vmatpush2.msra.mxu0 0.0
      %498 = vmatprep.subr.mxu0 0.0
      %499 = vmatpush2.msra.mxu0 0.0
      %500 = vmatprep.mubr.f32.mxu0 0.0
      %v501 = vand.u32 %v407, 4294901760
      %v502 = vsub.f32 %v407, %v501
      %v503 = vand.u32 %v502, 4294901760
      %v504 = vsub.f32 %v502, %v503
      %v505 = vand.u32 %v504, 4294901760
      %506 = vmatmul.mubr.f32.gmra.mxu0 %v505
      %v507 = vpop.f32.mrf.mxu0
      %v508 = vadd.f32 %v388, %v507
      %v509 = vpop.f32.mrf.mxu0
      %v510 = vadd.f32 %v388, %v509
      %511 = vmatprep.mubr.f32.mxu0 0.0
      %v512 = vand.u32 %v410, 4294901760
      %v513 = vsub.f32 %v410, %v512
      %v514 = vand.u32 %v513, 4294901760
      %v515 = vsub.f32 %v513, %v514
      %v516 = vand.u32 %v515, 4294901760
      %517 = vmatmul.mubr.f32.gmra.mxu0 %v516
      %v518 = vpop.f32.mrf.mxu0
      %v519 = vadd.f32 %v393, %v518
      %v520 = vpop.f32.mrf.mxu0
      %v521 = vadd.f32 %v393, %v520
      %522 = vmatprep.mubr.f32.mxu0 0.0
      %v523 = vand.u32 %v413, 4294901760
      %v524 = vsub.f32 %v413, %v523
      %v525 = vand.u32 %v524, 4294901760
      %v526 = vsub.f32 %v524, %v525
      %v527 = vand.u32 %v526, 4294901760
      %528 = vmatmul.mubr.f32.gmra.mxu0 %v527
      %v529 = vpop.f32.mrf.mxu0
      %v530 = vadd.f32 %v398, %v529
      %v531 = vpop.f32.mrf.mxu0
      %v532 = vadd.f32 %v398, %v531
      %533 = vmatprep.mubr.f32.mxu0 0.0
      %v534 = vand.u32 %v416, 4294901760
      %v535 = vsub.f32 %v416, %v534
      %v536 = vand.u32 %v535, 4294901760
      %v537 = vsub.f32 %v535, %v536
      %v538 = vand.u32 %v537, 4294901760
      %539 = vmatmul.mubr.f32.gmra.mxu0 %v538
      %v540 = vpop.f32.mrf.mxu0
      %v541 = vadd.f32 %v403, %v540
      %v542 = vpop.f32.mrf.mxu0
      %v543 = vadd.f32 %v403, %v542
      %544 = vdwg.mxu0
      %545 = vmatprep.subr.mxu0 0.0
      %546 = vmatpush1.msra.mxu0 0.0
      %547 = vmatprep.subr.mxu0 0.0
      %548 = vmatpush1.msra.mxu0 0.0
      %549 = vmatprep.subr.mxu0 0.0
      %550 = vmatpush1.msra.mxu0 0.0
      %551 = vmatprep.subr.mxu0 0.0
      %552 = vmatpush1.msra.mxu0 0.0
      %553 = vmatprep.subr.mxu0 0.0
      %554 = vmatpush1.msra.mxu0 0.0
      %555 = vmatprep.subr.mxu0 0.0
      %556 = vmatpush1.msra.mxu0 0.0
      %557 = vmatprep.subr.mxu0 0.0
      %558 = vmatpush1.msra.mxu0 0.0
      %v559 = vand.u32 %v376, 4294901760
      %v560 = vsub.f32 %v376, %v559
      %v561 = vand.u32 %v560, 4294901760
      %v562 = vsub.f32 %v560, %v561
      %v563 = vand.u32 %v562, 4294901760
      %564 = vmatprep.subr.mxu0 %v563
      %v565 = vand.u32 %v375, 4294901760
      %v566 = vsub.f32 %v375, %v565
      %v567 = vand.u32 %v566, 4294901760
      %v568 = vsub.f32 %v566, %v567
      %v569 = vand.u32 %v568, 4294901760
      %570 = vmatpush1.msra.mxu0 %v569
      %v571 = vand.u32 %v354, 4294901760
      %v572 = vsub.f32 %v354, %v571
      %v573 = vand.u32 %v572, 4294901760
      %v574 = vsub.f32 %v572, %v573
      %v575 = vand.u32 %v574, 4294901760
      %576 = vmatprep.subr.mxu0 %v575
      %v577 = vand.u32 %v353, 4294901760
      %v578 = vsub.f32 %v353, %v577
      %v579 = vand.u32 %v578, 4294901760
      %v580 = vsub.f32 %v578, %v579
      %v581 = vand.u32 %v580, 4294901760
      %582 = vmatpush1.msra.mxu0 %v581
      %v583 = vand.u32 %v332, 4294901760
      %v584 = vsub.f32 %v332, %v583
      %v585 = vand.u32 %v584, 4294901760
      %v586 = vsub.f32 %v584, %v585
      %v587 = vand.u32 %v586, 4294901760
      %588 = vmatprep.subr.mxu0 %v587
      %v589 = vand.u32 %v331, 4294901760
      %v590 = vsub.f32 %v331, %v589
      %v591 = vand.u32 %v590, 4294901760
      %v592 = vsub.f32 %v590, %v591
      %v593 = vand.u32 %v592, 4294901760
      %594 = vmatpush1.msra.mxu0 %v593
      %v595 = vand.u32 %v310, 4294901760
      %v596 = vsub.f32 %v310, %v595
      %v597 = vand.u32 %v596, 4294901760
      %v598 = vsub.f32 %v596, %v597
      %v599 = vand.u32 %v598, 4294901760
      %600 = vmatprep.subr.mxu0 %v599
      %v601 = vand.u32 %v309, 4294901760
      %v602 = vsub.f32 %v309, %v601
      %v603 = vand.u32 %v602, 4294901760
      %v604 = vsub.f32 %v602, %v603
      %v605 = vand.u32 %v604, 4294901760
      %606 = vmatpush1.msra.mxu0 %v605
      %v607 = vand.u32 %v199, 4294901760
      %v608 = vsub.f32 %v199, %v607
      %v609 = vand.u32 %v608, 4294901760
      %v610 = vsub.f32 %v608, %v609
      %v611 = vand.u32 %v610, 4294901760
      %612 = vmatprep.subr.mxu0 %v611
      %v613 = vand.u32 %v198, 4294901760
      %v614 = vsub.f32 %v198, %v613
      %v615 = vand.u32 %v614, 4294901760
      %v616 = vsub.f32 %v614, %v615
      %v617 = vand.u32 %v616, 4294901760
      %618 = vmatpush1.msra.mxu0 %v617
      %v619 = vand.u32 %v288, 4294901760
      %v620 = vsub.f32 %v288, %v619
      %v621 = vand.u32 %v620, 4294901760
      %v622 = vsub.f32 %v620, %v621
      %v623 = vand.u32 %v622, 4294901760
      %624 = vmatprep.subr.mxu0 %v623
      %v625 = vand.u32 %v287, 4294901760
      %v626 = vsub.f32 %v287, %v625
      %v627 = vand.u32 %v626, 4294901760
      %v628 = vsub.f32 %v626, %v627
      %v629 = vand.u32 %v628, 4294901760
      %630 = vmatpush1.msra.mxu0 %v629
      %v631 = vand.u32 %v266, 4294901760
      %v632 = vsub.f32 %v266, %v631
      %v633 = vand.u32 %v632, 4294901760
      %v634 = vsub.f32 %v632, %v633
      %v635 = vand.u32 %v634, 4294901760
      %636 = vmatprep.subr.mxu0 %v635
      %v637 = vand.u32 %v265, 4294901760
      %v638 = vsub.f32 %v265, %v637
      %v639 = vand.u32 %v638, 4294901760
      %v640 = vsub.f32 %v638, %v639
      %v641 = vand.u32 %v640, 4294901760
      %642 = vmatpush1.msra.mxu0 %v641
      %v643 = vand.u32 %v244, 4294901760
      %v644 = vsub.f32 %v244, %v643
      %v645 = vand.u32 %v644, 4294901760
      %v646 = vsub.f32 %v644, %v645
      %v647 = vand.u32 %v646, 4294901760
      %648 = vmatprep.subr.mxu0 %v647
      %v649 = vand.u32 %v243, 4294901760
      %v650 = vsub.f32 %v243, %v649
      %v651 = vand.u32 %v650, 4294901760
      %v652 = vsub.f32 %v650, %v651
      %v653 = vand.u32 %v652, 4294901760
      %654 = vmatpush1.msra.mxu0 %v653
      %v655 = vand.u32 %v222, 4294901760
      %v656 = vsub.f32 %v222, %v655
      %v657 = vand.u32 %v656, 4294901760
      %v658 = vsub.f32 %v656, %v657
      %v659 = vand.u32 %v658, 4294901760
      %660 = vmatprep.subr.mxu0 %v659
      %v661 = vand.u32 %v221, 4294901760
      %v662 = vsub.f32 %v221, %v661
      %v663 = vand.u32 %v662, 4294901760
      %v664 = vsub.f32 %v662, %v663
      %v665 = vand.u32 %v664, 4294901760
      %666 = vmatpush1.msra.mxu0 %v665
      %667 = vmatprep.subr.mxu0 0.0
      %668 = vmatpush2.msra.mxu0 0.0
      %669 = vmatprep.subr.mxu0 0.0
      %670 = vmatpush2.msra.mxu0 0.0
      %671 = vmatprep.subr.mxu0 0.0
      %672 = vmatpush2.msra.mxu0 0.0
      %673 = vmatprep.subr.mxu0 0.0
      %674 = vmatpush2.msra.mxu0 0.0
      %675 = vmatprep.subr.mxu0 0.0
      %676 = vmatpush2.msra.mxu0 0.0
      %677 = vmatprep.subr.mxu0 0.0
      %678 = vmatpush2.msra.mxu0 0.0
      %679 = vmatprep.subr.mxu0 0.0
      %680 = vmatpush2.msra.mxu0 0.0
      %681 = vmatprep.subr.mxu0 0.0
      %682 = vmatpush2.msra.mxu0 0.0
      %683 = vmatprep.subr.mxu0 0.0
      %684 = vmatpush2.msra.mxu0 0.0
      %685 = vmatprep.subr.mxu0 0.0
      %686 = vmatpush2.msra.mxu0 0.0
      %687 = vmatprep.subr.mxu0 0.0
      %688 = vmatpush2.msra.mxu0 0.0
      %689 = vmatprep.subr.mxu0 0.0
      %690 = vmatpush2.msra.mxu0 0.0
      %691 = vmatprep.subr.mxu0 0.0
      %692 = vmatpush2.msra.mxu0 0.0
      %693 = vmatprep.subr.mxu0 0.0
      %694 = vmatpush2.msra.mxu0 0.0
      %695 = vmatprep.subr.mxu0 0.0
      %696 = vmatpush2.msra.mxu0 0.0
      %697 = vmatprep.subr.mxu0 0.0
      %698 = vmatpush2.msra.mxu0 0.0
      %699 = vmatprep.mubr.f32.mxu0 0.0
      %v700 = vand.u32 %v407, 4294901760
      %701 = vmatmul.mubr.f32.gmra.mxu0 %v700
      %v702 = vpop.f32.mrf.mxu0
      %v703 = vadd.f32 %v508, %v702
      %v704 = vpop.f32.mrf.mxu0
      %v705 = vadd.f32 %v510, %v704
      %706 = vmatprep.mubr.f32.mxu0 0.0
      %v707 = vand.u32 %v410, 4294901760
      %708 = vmatmul.mubr.f32.gmra.mxu0 %v707
      %v709 = vpop.f32.mrf.mxu0
      %v710 = vadd.f32 %v519, %v709
      %v711 = vpop.f32.mrf.mxu0
      %v712 = vadd.f32 %v521, %v711
      %713 = vmatprep.mubr.f32.mxu0 0.0
      %v714 = vand.u32 %v413, 4294901760
      %715 = vmatmul.mubr.f32.gmra.mxu0 %v714
      %v716 = vpop.f32.mrf.mxu0
      %v717 = vadd.f32 %v530, %v716
      %v718 = vpop.f32.mrf.mxu0
      %v719 = vadd.f32 %v532, %v718
      %720 = vmatprep.mubr.f32.mxu0 0.0
      %v721 = vand.u32 %v416, 4294901760
      %722 = vmatmul.mubr.f32.gmra.mxu0 %v721
      %v723 = vpop.f32.mrf.mxu0
      %v724 = vadd.f32 %v541, %v723
      %v725 = vpop.f32.mrf.mxu0
      %v726 = vadd.f32 %v543, %v725
      %727 = vdwg.mxu0
      %728 = vmatprep.subr.mxu0 0.0
      %729 = vmatpush1.msra.mxu0 0.0
      %730 = vmatprep.subr.mxu0 0.0
      %731 = vmatpush1.msra.mxu0 0.0
      %732 = vmatprep.subr.mxu0 0.0
      %733 = vmatpush1.msra.mxu0 0.0
      %734 = vmatprep.subr.mxu0 0.0
      %735 = vmatpush1.msra.mxu0 0.0
      %736 = vmatprep.subr.mxu0 0.0
      %737 = vmatpush1.msra.mxu0 0.0
      %738 = vmatprep.subr.mxu0 0.0
      %739 = vmatpush1.msra.mxu0 0.0
      %740 = vmatprep.subr.mxu0 0.0
      %741 = vmatpush1.msra.mxu0 0.0
      %v742 = vand.u32 %v376, 4294901760
      %v743 = vsub.f32 %v376, %v742
      %744 = vmatprep.subr.mxu0 %v743
      %v745 = vand.u32 %v375, 4294901760
      %v746 = vsub.f32 %v375, %v745
      %747 = vmatpush1.msra.mxu0 %v746
      %v748 = vand.u32 %v354, 4294901760
      %v749 = vsub.f32 %v354, %v748
      %750 = vmatprep.subr.mxu0 %v749
      %v751 = vand.u32 %v353, 4294901760
      %v752 = vsub.f32 %v353, %v751
      %753 = vmatpush1.msra.mxu0 %v752
      %v754 = vand.u32 %v332, 4294901760
      %v755 = vsub.f32 %v332, %v754
      %756 = vmatprep.subr.mxu0 %v755
      %v757 = vand.u32 %v331, 4294901760
      %v758 = vsub.f32 %v331, %v757
      %759 = vmatpush1.msra.mxu0 %v758
      %v760 = vand.u32 %v310, 4294901760
      %v761 = vsub.f32 %v310, %v760
      %762 = vmatprep.subr.mxu0 %v761
      %v763 = vand.u32 %v309, 4294901760
      %v764 = vsub.f32 %v309, %v763
      %765 = vmatpush1.msra.mxu0 %v764
      %v766 = vand.u32 %v199, 4294901760
      %v767 = vsub.f32 %v199, %v766
      %768 = vmatprep.subr.mxu0 %v767
      %v769 = vand.u32 %v198, 4294901760
      %v770 = vsub.f32 %v198, %v769
      %771 = vmatpush1.msra.mxu0 %v770
      %v772 = vand.u32 %v288, 4294901760
      %v773 = vsub.f32 %v288, %v772
      %774 = vmatprep.subr.mxu0 %v773
      %v775 = vand.u32 %v287, 4294901760
      %v776 = vsub.f32 %v287, %v775
      %777 = vmatpush1.msra.mxu0 %v776
      %v778 = vand.u32 %v266, 4294901760
      %v779 = vsub.f32 %v266, %v778
      %780 = vmatprep.subr.mxu0 %v779
      %v781 = vand.u32 %v265, 4294901760
      %v782 = vsub.f32 %v265, %v781
      %783 = vmatpush1.msra.mxu0 %v782
      %v784 = vand.u32 %v244, 4294901760
      %v785 = vsub.f32 %v244, %v784
      %786 = vmatprep.subr.mxu0 %v785
      %v787 = vand.u32 %v243, 4294901760
      %v788 = vsub.f32 %v243, %v787
      %789 = vmatpush1.msra.mxu0 %v788
      %v790 = vand.u32 %v222, 4294901760
      %v791 = vsub.f32 %v222, %v790
      %792 = vmatprep.subr.mxu0 %v791
      %v793 = vand.u32 %v221, 4294901760
      %v794 = vsub.f32 %v221, %v793
      %795 = vmatpush1.msra.mxu0 %v794
      %796 = vmatprep.subr.mxu0 0.0
      %797 = vmatpush2.msra.mxu0 0.0
      %798 = vmatprep.subr.mxu0 0.0
      %799 = vmatpush2.msra.mxu0 0.0
      %800 = vmatprep.subr.mxu0 0.0
      %801 = vmatpush2.msra.mxu0 0.0
      %802 = vmatprep.subr.mxu0 0.0
      %803 = vmatpush2.msra.mxu0 0.0
      %804 = vmatprep.subr.mxu0 0.0
      %805 = vmatpush2.msra.mxu0 0.0
      %806 = vmatprep.subr.mxu0 0.0
      %807 = vmatpush2.msra.mxu0 0.0
      %808 = vmatprep.subr.mxu0 0.0
      %809 = vmatpush2.msra.mxu0 0.0
      %810 = vmatprep.subr.mxu0 0.0
      %811 = vmatpush2.msra.mxu0 0.0
      %812 = vmatprep.subr.mxu0 0.0
      %813 = vmatpush2.msra.mxu0 0.0
      %814 = vmatprep.subr.mxu0 0.0
      %815 = vmatpush2.msra.mxu0 0.0
      %816 = vmatprep.subr.mxu0 0.0
      %817 = vmatpush2.msra.mxu0 0.0
      %818 = vmatprep.subr.mxu0 0.0
      %819 = vmatpush2.msra.mxu0 0.0
      %820 = vmatprep.subr.mxu0 0.0
      %821 = vmatpush2.msra.mxu0 0.0
      %822 = vmatprep.subr.mxu0 0.0
      %823 = vmatpush2.msra.mxu0 0.0
      %824 = vmatprep.subr.mxu0 0.0
      %825 = vmatpush2.msra.mxu0 0.0
      %826 = vmatprep.subr.mxu0 0.0
      %827 = vmatpush2.msra.mxu0 0.0
      %828 = vmatprep.mubr.f32.mxu0 0.0
      %v829 = vand.u32 %v407, 4294901760
      %v830 = vsub.f32 %v407, %v829
      %831 = vmatmul.mubr.f32.gmra.mxu0 %v830
      %v832 = vpop.f32.mrf.mxu0
      %v833 = vadd.f32 %v703, %v832
      %v834 = vpop.f32.mrf.mxu0
      %v835 = vadd.f32 %v705, %v834
      %836 = vmatprep.mubr.f32.mxu0 0.0
      %v837 = vand.u32 %v410, 4294901760
      %v838 = vsub.f32 %v410, %v837
      %839 = vmatmul.mubr.f32.gmra.mxu0 %v838
      %v840 = vpop.f32.mrf.mxu0
      %v841 = vadd.f32 %v710, %v840
      %v842 = vpop.f32.mrf.mxu0
      %v843 = vadd.f32 %v712, %v842
      %844 = vmatprep.mubr.f32.mxu0 0.0
      %v845 = vand.u32 %v413, 4294901760
      %v846 = vsub.f32 %v413, %v845
      %847 = vmatmul.mubr.f32.gmra.mxu0 %v846
      %v848 = vpop.f32.mrf.mxu0
      %v849 = vadd.f32 %v717, %v848
      %v850 = vpop.f32.mrf.mxu0
      %v851 = vadd.f32 %v719, %v850
      %852 = vmatprep.mubr.f32.mxu0 0.0
      %v853 = vand.u32 %v416, 4294901760
      %v854 = vsub.f32 %v416, %v853
      %855 = vmatmul.mubr.f32.gmra.mxu0 %v854
      %v856 = vpop.f32.mrf.mxu0
      %v857 = vadd.f32 %v724, %v856
      %v858 = vpop.f32.mrf.mxu0
      %v859 = vadd.f32 %v726, %v858
      %860 = vdwg.mxu0
      %861 = vmatprep.subr.mxu0 0.0
      %862 = vmatpush1.msra.mxu0 0.0
      %863 = vmatprep.subr.mxu0 0.0
      %864 = vmatpush1.msra.mxu0 0.0
      %865 = vmatprep.subr.mxu0 0.0
      %866 = vmatpush1.msra.mxu0 0.0
      %867 = vmatprep.subr.mxu0 0.0
      %868 = vmatpush1.msra.mxu0 0.0
      %869 = vmatprep.subr.mxu0 0.0
      %870 = vmatpush1.msra.mxu0 0.0
      %871 = vmatprep.subr.mxu0 0.0
      %872 = vmatpush1.msra.mxu0 0.0
      %873 = vmatprep.subr.mxu0 0.0
      %874 = vmatpush1.msra.mxu0 0.0
      %v875 = vand.u32 %v376, 4294901760
      %876 = vmatprep.subr.mxu0 %v875
      %v877 = vand.u32 %v375, 4294901760
      %878 = vmatpush1.msra.mxu0 %v877
      %v879 = vand.u32 %v354, 4294901760
      %880 = vmatprep.subr.mxu0 %v879
      %v881 = vand.u32 %v353, 4294901760
      %882 = vmatpush1.msra.mxu0 %v881
      %v883 = vand.u32 %v332, 4294901760
      %884 = vmatprep.subr.mxu0 %v883
      %v885 = vand.u32 %v331, 4294901760
      %886 = vmatpush1.msra.mxu0 %v885
      %v887 = vand.u32 %v310, 4294901760
      %888 = vmatprep.subr.mxu0 %v887
      %v889 = vand.u32 %v309, 4294901760
      %890 = vmatpush1.msra.mxu0 %v889
      %v891 = vand.u32 %v199, 4294901760
      %892 = vmatprep.subr.mxu0 %v891
      %v893 = vand.u32 %v198, 4294901760
      %894 = vmatpush1.msra.mxu0 %v893
      %v895 = vand.u32 %v288, 4294901760
      %896 = vmatprep.subr.mxu0 %v895
      %v897 = vand.u32 %v287, 4294901760
      %898 = vmatpush1.msra.mxu0 %v897
      %v899 = vand.u32 %v266, 4294901760
      %900 = vmatprep.subr.mxu0 %v899
      %v901 = vand.u32 %v265, 4294901760
      %902 = vmatpush1.msra.mxu0 %v901
      %v903 = vand.u32 %v244, 4294901760
      %904 = vmatprep.subr.mxu0 %v903
      %v905 = vand.u32 %v243, 4294901760
      %906 = vmatpush1.msra.mxu0 %v905
      %v907 = vand.u32 %v222, 4294901760
      %908 = vmatprep.subr.mxu0 %v907
      %v909 = vand.u32 %v221, 4294901760
      %910 = vmatpush1.msra.mxu0 %v909
      %911 = vmatprep.subr.mxu0 0.0
      %912 = vmatpush2.msra.mxu0 0.0
      %913 = vmatprep.subr.mxu0 0.0
      %914 = vmatpush2.msra.mxu0 0.0
      %915 = vmatprep.subr.mxu0 0.0
      %916 = vmatpush2.msra.mxu0 0.0
      %917 = vmatprep.subr.mxu0 0.0
      %918 = vmatpush2.msra.mxu0 0.0
      %919 = vmatprep.subr.mxu0 0.0
      %920 = vmatpush2.msra.mxu0 0.0
      %921 = vmatprep.subr.mxu0 0.0
      %922 = vmatpush2.msra.mxu0 0.0
      %923 = vmatprep.subr.mxu0 0.0
      %924 = vmatpush2.msra.mxu0 0.0
      %925 = vmatprep.subr.mxu0 0.0
      %926 = vmatpush2.msra.mxu0 0.0
      %927 = vmatprep.subr.mxu0 0.0
      %928 = vmatpush2.msra.mxu0 0.0
      %929 = vmatprep.subr.mxu0 0.0
      %930 = vmatpush2.msra.mxu0 0.0
      %931 = vmatprep.subr.mxu0 0.0
      %932 = vmatpush2.msra.mxu0 0.0
      %933 = vmatprep.subr.mxu0 0.0
      %934 = vmatpush2.msra.mxu0 0.0
      %935 = vmatprep.subr.mxu0 0.0
      %936 = vmatpush2.msra.mxu0 0.0
      %937 = vmatprep.subr.mxu0 0.0
      %938 = vmatpush2.msra.mxu0 0.0
      %939 = vmatprep.subr.mxu0 0.0
      %940 = vmatpush2.msra.mxu0 0.0
      %941 = vmatprep.subr.mxu0 0.0
      %942 = vmatpush2.msra.mxu0 0.0
      %943 = vmatprep.mubr.f32.mxu0 0.0
      %v944 = vand.u32 %v407, 4294901760
      %v945 = vsub.f32 %v407, %v944
      %v946 = vand.u32 %v945, 4294901760
      %947 = vmatmul.mubr.f32.gmra.mxu0 %v946
      %v948 = vpop.f32.mrf.mxu0
      %v949 = vadd.f32 %v833, %v948
      %v950 = vpop.f32.mrf.mxu0
      %v951 = vadd.f32 %v835, %v950
      %952 = vmatprep.mubr.f32.mxu0 0.0
      %v953 = vand.u32 %v410, 4294901760
      %v954 = vsub.f32 %v410, %v953
      %v955 = vand.u32 %v954, 4294901760
      %956 = vmatmul.mubr.f32.gmra.mxu0 %v955
      %v957 = vpop.f32.mrf.mxu0
      %v958 = vadd.f32 %v841, %v957
      %v959 = vpop.f32.mrf.mxu0
      %v960 = vadd.f32 %v843, %v959
      %961 = vmatprep.mubr.f32.mxu0 0.0
      %v962 = vand.u32 %v413, 4294901760
      %v963 = vsub.f32 %v413, %v962
      %v964 = vand.u32 %v963, 4294901760
      %965 = vmatmul.mubr.f32.gmra.mxu0 %v964
      %v966 = vpop.f32.mrf.mxu0
      %v967 = vadd.f32 %v849, %v966
      %v968 = vpop.f32.mrf.mxu0
      %v969 = vadd.f32 %v851, %v968
      %970 = vmatprep.mubr.f32.mxu0 0.0
      %v971 = vand.u32 %v416, 4294901760
      %v972 = vsub.f32 %v416, %v971
      %v973 = vand.u32 %v972, 4294901760
      %974 = vmatmul.mubr.f32.gmra.mxu0 %v973
      %v975 = vpop.f32.mrf.mxu0
      %v976 = vadd.f32 %v857, %v975
      %v977 = vpop.f32.mrf.mxu0
      %v978 = vadd.f32 %v859, %v977
      %979 = vdwg.mxu0
      %980 = vmatprep.subr.mxu0 0.0
      %981 = vmatpush1.msra.mxu0 0.0
      %982 = vmatprep.subr.mxu0 0.0
      %983 = vmatpush1.msra.mxu0 0.0
      %984 = vmatprep.subr.mxu0 0.0
      %985 = vmatpush1.msra.mxu0 0.0
      %986 = vmatprep.subr.mxu0 0.0
      %987 = vmatpush1.msra.mxu0 0.0
      %988 = vmatprep.subr.mxu0 0.0
      %989 = vmatpush1.msra.mxu0 0.0
      %990 = vmatprep.subr.mxu0 0.0
      %991 = vmatpush1.msra.mxu0 0.0
      %992 = vmatprep.subr.mxu0 0.0
      %993 = vmatpush1.msra.mxu0 0.0
      %v994 = vand.u32 %v376, 4294901760
      %v995 = vsub.f32 %v376, %v994
      %v996 = vand.u32 %v995, 4294901760
      %997 = vmatprep.subr.mxu0 %v996
      %v998 = vand.u32 %v375, 4294901760
      %v999 = vsub.f32 %v375, %v998
      %v1000 = vand.u32 %v999, 4294901760
      %1001 = vmatpush1.msra.mxu0 %v1000
      %v1002 = vand.u32 %v354, 4294901760
      %v1003 = vsub.f32 %v354, %v1002
      %v1004 = vand.u32 %v1003, 4294901760
      %1005 = vmatprep.subr.mxu0 %v1004
      %v1006 = vand.u32 %v353, 4294901760
      %v1007 = vsub.f32 %v353, %v1006
      %v1008 = vand.u32 %v1007, 4294901760
      %1009 = vmatpush1.msra.mxu0 %v1008
      %v1010 = vand.u32 %v332, 4294901760
      %v1011 = vsub.f32 %v332, %v1010
      %v1012 = vand.u32 %v1011, 4294901760
      %1013 = vmatprep.subr.mxu0 %v1012
      %v1014 = vand.u32 %v331, 4294901760
      %v1015 = vsub.f32 %v331, %v1014
      %v1016 = vand.u32 %v1015, 4294901760
      %1017 = vmatpush1.msra.mxu0 %v1016
      %v1018 = vand.u32 %v310, 4294901760
      %v1019 = vsub.f32 %v310, %v1018
      %v1020 = vand.u32 %v1019, 4294901760
      %1021 = vmatprep.subr.mxu0 %v1020
      %v1022 = vand.u32 %v309, 4294901760
      %v1023 = vsub.f32 %v309, %v1022
      %v1024 = vand.u32 %v1023, 4294901760
      %1025 = vmatpush1.msra.mxu0 %v1024
      %v1026 = vand.u32 %v199, 4294901760
      %v1027 = vsub.f32 %v199, %v1026
      %v1028 = vand.u32 %v1027, 4294901760
      %1029 = vmatprep.subr.mxu0 %v1028
      %v1030 = vand.u32 %v198, 4294901760
      %v1031 = vsub.f32 %v198, %v1030
      %v1032 = vand.u32 %v1031, 4294901760
      %1033 = vmatpush1.msra.mxu0 %v1032
      %v1034 = vand.u32 %v288, 4294901760
      %v1035 = vsub.f32 %v288, %v1034
      %v1036 = vand.u32 %v1035, 4294901760
      %1037 = vmatprep.subr.mxu0 %v1036
      %v1038 = vand.u32 %v287, 4294901760
      %v1039 = vsub.f32 %v287, %v1038
      %v1040 = vand.u32 %v1039, 4294901760
      %1041 = vmatpush1.msra.mxu0 %v1040
      %v1042 = vand.u32 %v266, 4294901760
      %v1043 = vsub.f32 %v266, %v1042
      %v1044 = vand.u32 %v1043, 4294901760
      %1045 = vmatprep.subr.mxu0 %v1044
      %v1046 = vand.u32 %v265, 4294901760
      %v1047 = vsub.f32 %v265, %v1046
      %v1048 = vand.u32 %v1047, 4294901760
      %1049 = vmatpush1.msra.mxu0 %v1048
      %v1050 = vand.u32 %v244, 4294901760
      %v1051 = vsub.f32 %v244, %v1050
      %v1052 = vand.u32 %v1051, 4294901760
      %1053 = vmatprep.subr.mxu0 %v1052
      %v1054 = vand.u32 %v243, 4294901760
      %v1055 = vsub.f32 %v243, %v1054
      %v1056 = vand.u32 %v1055, 4294901760
      %1057 = vmatpush1.msra.mxu0 %v1056
      %v1058 = vand.u32 %v222, 4294901760
      %v1059 = vsub.f32 %v222, %v1058
      %v1060 = vand.u32 %v1059, 4294901760
      %1061 = vmatprep.subr.mxu0 %v1060
      %v1062 = vand.u32 %v221, 4294901760
      %v1063 = vsub.f32 %v221, %v1062
      %v1064 = vand.u32 %v1063, 4294901760
      %1065 = vmatpush1.msra.mxu0 %v1064
      %1066 = vmatprep.subr.mxu0 0.0
      %1067 = vmatpush2.msra.mxu0 0.0
      %1068 = vmatprep.subr.mxu0 0.0
      %1069 = vmatpush2.msra.mxu0 0.0
      %1070 = vmatprep.subr.mxu0 0.0
      %1071 = vmatpush2.msra.mxu0 0.0
      %1072 = vmatprep.subr.mxu0 0.0
      %1073 = vmatpush2.msra.mxu0 0.0
      %1074 = vmatprep.subr.mxu0 0.0
      %1075 = vmatpush2.msra.mxu0 0.0
      %1076 = vmatprep.subr.mxu0 0.0
      %1077 = vmatpush2.msra.mxu0 0.0
      %1078 = vmatprep.subr.mxu0 0.0
      %1079 = vmatpush2.msra.mxu0 0.0
      %1080 = vmatprep.subr.mxu0 0.0
      %1081 = vmatpush2.msra.mxu0 0.0
      %1082 = vmatprep.subr.mxu0 0.0
      %1083 = vmatpush2.msra.mxu0 0.0
      %1084 = vmatprep.subr.mxu0 0.0
      %1085 = vmatpush2.msra.mxu0 0.0
      %1086 = vmatprep.subr.mxu0 0.0
      %1087 = vmatpush2.msra.mxu0 0.0
      %1088 = vmatprep.subr.mxu0 0.0
      %1089 = vmatpush2.msra.mxu0 0.0
      %1090 = vmatprep.subr.mxu0 0.0
      %1091 = vmatpush2.msra.mxu0 0.0
      %1092 = vmatprep.subr.mxu0 0.0
      %1093 = vmatpush2.msra.mxu0 0.0
      %1094 = vmatprep.subr.mxu0 0.0
      %1095 = vmatpush2.msra.mxu0 0.0
      %1096 = vmatprep.subr.mxu0 0.0
      %1097 = vmatpush2.msra.mxu0 0.0
      %1098 = vmatprep.mubr.f32.mxu0 0.0
      %v1099 = vand.u32 %v407, 4294901760
      %1100 = vmatmul.mubr.f32.gmra.mxu0 %v1099
      %v1101 = vpop.f32.mrf.mxu0
      %v1102 = vadd.f32 %v949, %v1101
      %v1103 = vpop.f32.mrf.mxu0
      %v1104 = vadd.f32 %v951, %v1103
      %1105 = vmatprep.mubr.f32.mxu0 0.0
      %v1106 = vand.u32 %v410, 4294901760
      %1107 = vmatmul.mubr.f32.gmra.mxu0 %v1106
      %v1108 = vpop.f32.mrf.mxu0
      %v1109 = vadd.f32 %v958, %v1108
      %v1110 = vpop.f32.mrf.mxu0
      %v1111 = vadd.f32 %v960, %v1110
      %1112 = vmatprep.mubr.f32.mxu0 0.0
      %v1113 = vand.u32 %v413, 4294901760
      %1114 = vmatmul.mubr.f32.gmra.mxu0 %v1113
      %v1115 = vpop.f32.mrf.mxu0
      %v1116 = vadd.f32 %v967, %v1115
      %v1117 = vpop.f32.mrf.mxu0
      %v1118 = vadd.f32 %v969, %v1117
      %1119 = vmatprep.mubr.f32.mxu0 0.0
      %v1120 = vand.u32 %v416, 4294901760
      %1121 = vmatmul.mubr.f32.gmra.mxu0 %v1120
      %v1122 = vpop.f32.mrf.mxu0
      %v1123 = vadd.f32 %v976, %v1122
      %v1124 = vpop.f32.mrf.mxu0
      %v1125 = vadd.f32 %v978, %v1124
      %1126 = vdwg.mxu0
      %1127 = vmatprep.subr.mxu0 0.0
      %1128 = vmatpush1.msra.mxu0 0.0
      %1129 = vmatprep.subr.mxu0 0.0
      %1130 = vmatpush1.msra.mxu0 0.0
      %1131 = vmatprep.subr.mxu0 0.0
      %1132 = vmatpush1.msra.mxu0 0.0
      %1133 = vmatprep.subr.mxu0 0.0
      %1134 = vmatpush1.msra.mxu0 0.0
      %1135 = vmatprep.subr.mxu0 0.0
      %1136 = vmatpush1.msra.mxu0 0.0
      %1137 = vmatprep.subr.mxu0 0.0
      %1138 = vmatpush1.msra.mxu0 0.0
      %1139 = vmatprep.subr.mxu0 0.0
      %1140 = vmatpush1.msra.mxu0 0.0
      %v1141 = vand.u32 %v376, 4294901760
      %1142 = vmatprep.subr.mxu0 %v1141
      %v1143 = vand.u32 %v375, 4294901760
      %1144 = vmatpush1.msra.mxu0 %v1143
      %v1145 = vand.u32 %v354, 4294901760
      %1146 = vmatprep.subr.mxu0 %v1145
      %v1147 = vand.u32 %v353, 4294901760
      %1148 = vmatpush1.msra.mxu0 %v1147
      %v1149 = vand.u32 %v332, 4294901760
      %1150 = vmatprep.subr.mxu0 %v1149
      %v1151 = vand.u32 %v331, 4294901760
      %1152 = vmatpush1.msra.mxu0 %v1151
      %v1153 = vand.u32 %v310, 4294901760
      %1154 = vmatprep.subr.mxu0 %v1153
      %v1155 = vand.u32 %v309, 4294901760
      %1156 = vmatpush1.msra.mxu0 %v1155
      %v1157 = vand.u32 %v199, 4294901760
      %1158 = vmatprep.subr.mxu0 %v1157
      %v1159 = vand.u32 %v198, 4294901760
      %1160 = vmatpush1.msra.mxu0 %v1159
      %v1161 = vand.u32 %v288, 4294901760
      %1162 = vmatprep.subr.mxu0 %v1161
      %v1163 = vand.u32 %v287, 4294901760
      %1164 = vmatpush1.msra.mxu0 %v1163
      %v1165 = vand.u32 %v266, 4294901760
      %1166 = vmatprep.subr.mxu0 %v1165
      %v1167 = vand.u32 %v265, 4294901760
      %1168 = vmatpush1.msra.mxu0 %v1167
      %v1169 = vand.u32 %v244, 4294901760
      %1170 = vmatprep.subr.mxu0 %v1169
      %v1171 = vand.u32 %v243, 4294901760
      %1172 = vmatpush1.msra.mxu0 %v1171
      %v1173 = vand.u32 %v222, 4294901760
      %1174 = vmatprep.subr.mxu0 %v1173
      %v1175 = vand.u32 %v221, 4294901760
      %1176 = vmatpush1.msra.mxu0 %v1175
      %1177 = vmatprep.subr.mxu0 0.0
      %1178 = vmatpush2.msra.mxu0 0.0
      %1179 = vmatprep.subr.mxu0 0.0
      %1180 = vmatpush2.msra.mxu0 0.0
      %1181 = vmatprep.subr.mxu0 0.0
      %1182 = vmatpush2.msra.mxu0 0.0
      %1183 = vmatprep.subr.mxu0 0.0
      %1184 = vmatpush2.msra.mxu0 0.0
      %1185 = vmatprep.subr.mxu0 0.0
      %1186 = vmatpush2.msra.mxu0 0.0
      %1187 = vmatprep.subr.mxu0 0.0
      %1188 = vmatpush2.msra.mxu0 0.0
      %1189 = vmatprep.subr.mxu0 0.0
      %1190 = vmatpush2.msra.mxu0 0.0
      %1191 = vmatprep.subr.mxu0 0.0
      %1192 = vmatpush2.msra.mxu0 0.0
      %1193 = vmatprep.subr.mxu0 0.0
      %1194 = vmatpush2.msra.mxu0 0.0
      %1195 = vmatprep.subr.mxu0 0.0
      %1196 = vmatpush2.msra.mxu0 0.0
      %1197 = vmatprep.subr.mxu0 0.0
      %1198 = vmatpush2.msra.mxu0 0.0
      %1199 = vmatprep.subr.mxu0 0.0
      %1200 = vmatpush2.msra.mxu0 0.0
      %1201 = vmatprep.subr.mxu0 0.0
      %1202 = vmatpush2.msra.mxu0 0.0
      %1203 = vmatprep.subr.mxu0 0.0
      %1204 = vmatpush2.msra.mxu0 0.0
      %1205 = vmatprep.subr.mxu0 0.0
      %1206 = vmatpush2.msra.mxu0 0.0
      %1207 = vmatprep.subr.mxu0 0.0
      %1208 = vmatpush2.msra.mxu0 0.0
      %1209 = vmatprep.mubr.f32.mxu0 0.0
      %v1210 = vand.u32 %v407, 4294901760
      %1211 = vmatmul.mubr.f32.gmra.mxu0 %v1210
      %v1212 = vpop.f32.mrf.mxu0
      %v1213 = vadd.f32 %v1102, %v1212
      %v1214 = vpop.f32.mrf.mxu0
      %v1215 = vadd.f32 %v1104, %v1214
      %1216 = vmatprep.mubr.f32.mxu0 0.0
      %v1217 = vand.u32 %v410, 4294901760
      %1218 = vmatmul.mubr.f32.gmra.mxu0 %v1217
      %v1219 = vpop.f32.mrf.mxu0
      %v1220 = vadd.f32 %v1109, %v1219
      %v1221 = vpop.f32.mrf.mxu0
      %v1222 = vadd.f32 %v1111, %v1221
      %1223 = vmatprep.mubr.f32.mxu0 0.0
      %v1224 = vand.u32 %v413, 4294901760
      %1225 = vmatmul.mubr.f32.gmra.mxu0 %v1224
      %v1226 = vpop.f32.mrf.mxu0
      %v1227 = vadd.f32 %v1116, %v1226
      %v1228 = vpop.f32.mrf.mxu0
      %v1229 = vadd.f32 %v1118, %v1228
      %1230 = vmatprep.mubr.f32.mxu0 0.0
      %v1231 = vand.u32 %v416, 4294901760
      %1232 = vmatmul.mubr.f32.gmra.mxu0 %v1231
      %v1233 = vpop.f32.mrf.mxu0
      %v1234 = vadd.f32 %v1123, %v1233
      %v1235 = vpop.f32.mrf.mxu0
      %v1236 = vadd.f32 %v1125, %v1235
      %1237 = vdwg.mxu0
      %1238 = vst [vmem:[%s197] sm:$0xff] %v1213
      %1239 = vst [vmem:[%s197 + $0x8] sm:$0xff] %v1215
      %1240 = vst [vmem:[%s197 + $0x10] sm:$0xff] %v1220
      %1241 = vst [vmem:[%s197 + $0x18] sm:$0xff] %v1222
      %1242 = vst [vmem:[%s197 + $0x20] sm:$0xff] %v1227
      %1243 = vst [vmem:[%s197 + $0x28] sm:$0xff] %v1229
      %1244 = vst [vmem:[%s197 + $0x30] sm:$0xff] %v1234
      %1245 = vst [vmem:[%s197 + $0x38] sm:$0xff] %v1236
      %p1246 = scmp.lt.s32.totalorder %s15, 1
      %s1247 = scalar_select %p1246, %s15, 1
      %s1248 = smul.addr %s1247, 8
      %s1249 = smul.addr %s1248, 8
      %s1250 = scalar_lea.vmem %s4, %s1249
      // Predicated region
      $region37: #{fwd.1} parent=35 // pred_check
        %p1251 = pneg %p122
      $region38: #{fwd.1} parent=35 // pred_check_branch
        %1253 = sbr.rel (%p1251) target = $region40
      $region39: #{fwd.1} parent=35 // pred_region
        _
      $region40: #{fwd.1} parent=35 // pred_fallthru
        _
    $region36: #{fwd.1} parent=5 // pred_fallthru
      _
    %p1254 = scmp.le.s32.totalorder 2, %s10
    // Predicated region
    $region41: #{fwd.1} parent=5 // pred_check
      %p1255 = pneg %p1254
    $region42: #{fwd.1} parent=5 // pred_check_branch
      %1257 = sbr.rel (%p1255) target = $region44
    $region43: #{fwd.1} parent=5 // pred_region
      %s1258 = ssub.s32 %s10, 2
      // Predicated region
      $region45: #{fwd.1} parent=43 // pred_check
        %p1259 = pneg %p128
      $region46: #{fwd.1} parent=43 // pred_check_branch
        %1261 = sbr.rel (%p1259) target = $region48
      $region47: #{fwd.1} parent=43 // pred_region
        %p1262 = scmp.lt.s32.totalorder %s16, 1
        %s1263 = scalar_select %p1262, %s16, 1
        %s1264 = smul.addr %s1263, 8
        %s1265 = smul.addr %s1264, 8
        %s1266 = scalar_lea.vmem %s4, %s1265
      $region48: #{fwd.1} parent=43 // pred_fallthru
        _
    $region44: #{fwd.1} parent=5 // pred_fallthru
      _
  $region6: #{fwd.1} parent=0 // loop_footer
    %s14 = sadd.s32 1, %s10
  $region7: #{fwd.1} parent=0 // loop_footer_branch
    %9 = sbr.rel target = $region3
  $region8: #{fwd.1} parent=0 // loop_exit
    _

</llo_original>
